<compile_context>
chip_gen: v7x
topology: tpu7x:2x2x1
jax: 0.10.0
libtpu: 0.0.40
codegen_flags: <defaults>
</compile_context>

<pallas_src>
import jax
import jax.numpy as jnp
from jax import lax
from jax.experimental import pallas as pl
from jax.experimental.pallas import tpu as pltpu

_MIB = 1024 * 1024


def _pow(x, g):
    """x ** g for x >= 0; cheap repeated multiplies for small int g,
    exp(g*log(x)) (exact 0 at x<=0) otherwise -- avoids NaN for fractional g."""
    gf = float(g)
    if gf == int(gf) and 0 <= int(gf) <= 8:
        gi = int(gf)
        if gi == 0:
            return jnp.ones_like(x)
        r = x
        for _ in range(gi - 1):
            r = r * x
        return r
    safe = jnp.maximum(x, jnp.float32(1e-30))
    return jnp.where(x > 0, jnp.exp(jnp.float32(gf) * jnp.log(safe)),
                     jnp.zeros_like(x))


def _hw_budget():
    """(f32 tile byte budget, vmem_limit_bytes) based on the local TPU gen."""
    vmem_cap = 128 * _MIB
    try:
        info = pltpu.get_tpu_info()
        vmem_cap = int(getattr(info, "vmem_capacity_bytes", vmem_cap))
    except Exception:
        pass
    if vmem_cap <= 64 * _MIB:       # v7x-class: 64 MiB physical VMEM per TC
        tile_budget = 3 * _MIB
    else:                            # v5e / v6e: 128 MiB physical VMEM
        tile_budget = 6 * _MIB
    vmem_limit = min(100 * _MIB, (vmem_cap * 3) // 4)   # 48 MiB v7x, 96 MiB else
    return tile_budget, vmem_limit


def _round_up(x, m):
    return ((x + m - 1) // m) * m


def _prepare_alpha(alpha, c):
    if alpha is None:
        return None
    if isinstance(alpha, (float, int)):
        # PyTorch scalar convention: [alpha, 1 - alpha]
        alpha_vec = jnp.array([float(alpha), 1.0 - float(alpha)], jnp.float32)
    else:
        alpha_vec = jnp.asarray(alpha, dtype=jnp.float32).reshape(-1)
    if alpha_vec.shape[0] < c:
        # classes past the end of a short alpha table get weight 1.0
        alpha_vec = jnp.pad(alpha_vec, (0, c - alpha_vec.shape[0]),
                            constant_values=1.0)
    return alpha_vec[:c]


# --------------------------- Path A: (N, C) rows ----------------------------
def _rows_body(pred_ref, labels_ref, alpha_ref, out_ref, *, gamma, n_rows,
               tile_n):
    logits = pred_ref[...].astype(jnp.float32)               # (Tn, C)
    labels = labels_ref[...]                                 # (Tn, 1) int32
    tn, c = logits.shape

    row_max = jnp.max(logits, axis=-1, keepdims=True)        # (Tn, 1)
    shifted = logits - row_max
    lse = jnp.log(jnp.sum(jnp.exp(shifted), axis=-1, keepdims=True))

    col = lax.broadcasted_iota(jnp.int32, (tn, c), 1)
    onehot = col == labels
    picked = jnp.sum(jnp.where(onehot, shifted, 0.0), axis=-1, keepdims=True)

    logpt = picked - lse                                      # log p_t
    pt = jnp.exp(logpt)
    if alpha_ref is not None:
        # alpha_t was pre-gathered in the wrapper: (Tn, 1) f32
        logpt = logpt * alpha_ref[...].astype(jnp.float32)

    focal = -_pow(jnp.maximum(1.0 - pt, 0.0), gamma) * logpt

    # Mask rows past the true N (partial last block, no HBM pad) and any
    # out-of-range labels.  where() does not propagate NaN from garbage rows.
    row = pl.program_id(0) * tile_n + lax.broadcasted_iota(jnp.int32, (tn, 1), 0)
    valid = (row < n_rows) & (labels >= 0) & (labels < c)
    focal = jnp.where(valid, focal, 0.0)

    out_ref[...] = jnp.zeros(out_ref.shape, jnp.float32) + jnp.sum(focal)


def _make_rows_kernel(gamma, n_rows, tile_n, has_alpha):
    if has_alpha:
        def kernel(pred_ref, labels_ref, alpha_ref, out_ref):
            _rows_body(pred_ref, labels_ref, alpha_ref, out_ref,
                       gamma=gamma, n_rows=n_rows, tile_n=tile_n)
    else:
        def kernel(pred_ref, labels_ref, out_ref):
            _rows_body(pred_ref, labels_ref, None, out_ref,
                       gamma=gamma, n_rows=n_rows, tile_n=tile_n)
    return kernel


# ------------------- Path B: channel-first (B, C, S) ------------------------
def _cfirst_body(pred_ref, labels_ref, alpha_ref, out_ref, *, gamma, s_total,
                 tile_s):
    logits = pred_ref[...].astype(jnp.float32)               # (1, C, Ts)
    labels = labels_ref[...]                                 # (1, 1, Ts) int32
    _, c, ts = logits.shape

    cmax = jnp.max(logits, axis=1, keepdims=True)             # (1, 1, Ts)
    shifted = logits - cmax
    lse = jnp.log(jnp.sum(jnp.exp(shifted), axis=1, keepdims=True))

    cls = lax.broadcasted_iota(jnp.int32, (1, c, ts), 1)
    onehot = cls == labels
    picked = jnp.sum(jnp.where(onehot, shifted, 0.0), axis=1, keepdims=True)

    logpt = picked - lse                                      # (1, 1, Ts)
    pt = jnp.exp(logpt)
    if alpha_ref is not None:
        logpt = logpt * alpha_ref[...].astype(jnp.float32)

    focal = -_pow(jnp.maximum(1.0 - pt, 0.0), gamma) * logpt

    pos = pl.program_id(1) * tile_s + lax.broadcasted_iota(jnp.int32, (1, 1, ts), 2)
    valid = (pos < s_total) & (labels >= 0) & (labels < c)
    focal = jnp.where(valid, focal, 0.0)

    out_ref[...] = jnp.zeros(out_ref.shape, jnp.float32) + jnp.sum(focal)


def _make_cfirst_kernel(gamma, s_total, tile_s, has_alpha):
    if has_alpha:
        def kernel(pred_ref, labels_ref, alpha_ref, out_ref):
            _cfirst_body(pred_ref, labels_ref, alpha_ref, out_ref,
                         gamma=gamma, s_total=s_total, tile_s=tile_s)
    else:
        def kernel(pred_ref, labels_ref, out_ref):
            _cfirst_body(pred_ref, labels_ref, None, out_ref,
                         gamma=gamma, s_total=s_total, tile_s=tile_s)
    return kernel


# -------------------------------- wrapper ------------------------------------
def focal_loss(pred, target, *, gamma=2.0, alpha=None, size_average=True,
               tile_rows=None, tile_spatial=None):
    """FocalLoss forward.  pred: (N, C) or (B, C, *spatial) logits (f32/bf16),
    target: int class indices matching the batch/spatial shape.  Scalar out."""
    pred = jnp.asarray(pred)
    target = jnp.asarray(target).astype(jnp.int32)
    tile_budget, vmem_limit = _hw_budget()

    if pred.ndim > 2:
        # -------- channel-first path: (B, C, *spatial) -> (B, C, S) ---------
        b, c = pred.shape[0], pred.shape[1]
        pred3 = pred.reshape(b, c, -1)              # free reshape, no transpose
        s = pred3.shape[2]
        labels3 = target.reshape(b, 1, s)
        n_rows = b * s

        lane = 128
        if tile_spatial is not None:
            tile_s = int(tile_spatial)
        else:
            max_tile = max(lane, (tile_budget // max(1, c * 4)) // lane * lane)
            if s > max_tile:
                tile_s = max_tile
            elif b == 1 and s > 4 * lane:
                tile_s = _round_up((s + 1) // 2, lane)   # >=2 tiles for megacore
            else:
                tile_s = s
        n_s = -(-s // tile_s)

        in_specs = [
            pl.BlockSpec((1, c, tile_s), lambda bi, si: (bi, 0, si)),
            pl.BlockSpec((1, 1, tile_s), lambda bi, si: (bi, 0, si)),
        ]
        args = [pred3, labels3]

        alpha_vec = _prepare_alpha(alpha, c)
        has_alpha = alpha_vec is not None
        if has_alpha:
            alpha_t = alpha_vec[target.reshape(-1)].reshape(b, 1, s)
            in_specs.append(pl.BlockSpec((1, 1, tile_s),
                                         lambda bi, si: (bi, 0, si)))
            args.append(alpha_t)

        kernel = _make_cfirst_kernel(gamma, s, tile_s, has_alpha)
        partials = pl.pallas_call(
            kernel,
            out_shape=jax.ShapeDtypeStruct((b, n_s, 8, 128), jnp.float32),
            grid=(b, n_s),
            in_specs=in_specs,
            out_specs=pl.BlockSpec((1, 1, 8, 128), lambda bi, si: (bi, si, 0, 0)),
            compiler_params=pltpu.CompilerParams(
                dimension_semantics=("parallel", "parallel"),
                vmem_limit_bytes=vmem_limit),
        )(*args)
        total = jnp.sum(partials[:, :, 0, 0])
    else:
        # --------------------------- (N, C) path -----------------------------
        n, c = pred.shape
        labels2 = target.reshape(n, 1)
        n_rows = n

        align = 16
        if tile_rows is not None:
            tile_n = int(tile_rows)
        else:
            max_tile = max(align, (tile_budget // max(1, c * 4)) // align * align)
            if n > max_tile:
                tile_n = max_tile
            elif n > 4 * align:
                tile_n = _round_up((n + 1) // 2, align)  # >=2 tiles for megacore
            else:
                tile_n = n                               # single full block
        num_tiles = -(-n // tile_n)

        in_specs = [
            pl.BlockSpec((tile_n, c), lambda i: (i, 0)),
            pl.BlockSpec((tile_n, 1), lambda i: (i, 0)),
        ]
        args = [pred, labels2]

        alpha_vec = _prepare_alpha(alpha, c)
        has_alpha = alpha_vec is not None
        if has_alpha:
            alpha_t = alpha_vec[target.reshape(-1)].reshape(n, 1)
            in_specs.append(pl.BlockSpec((tile_n, 1), lambda i: (i, 0)))
            args.append(alpha_t)

        kernel = _make_rows_kernel(gamma, n, tile_n, has_alpha)
        partials = pl.pallas_call(
            kernel,
            out_shape=jax.ShapeDtypeStruct((num_tiles, 8, 128), jnp.float32),
            grid=(num_tiles,),
            in_specs=in_specs,
            out_specs=pl.BlockSpec((1, 8, 128), lambda i: (i, 0, 0)),
            compiler_params=pltpu.CompilerParams(
                dimension_semantics=("parallel",),
                vmem_limit_bytes=vmem_limit),
        )(*args)
        total = jnp.sum(partials[:, 0, 0])

    if size_average:
        return total / jnp.float32(n_rows)   # divide by the TRUE row count
    return total


# ---------------------------- pure-JAX reference ----------------------------
def _reference_focal(pred, target, gamma=2.0, alpha=None, size_average=True):
    pred = jnp.asarray(pred)
    if pred.ndim > 2:
        b, c = pred.shape[0], pred.shape[1]
        pred = pred.reshape(b, c, -1)
        pred = jnp.transpose(pred, (0, 2, 1)).reshape(-1, c)
    target = jnp.asarray(target).reshape(-1).astype(jnp.int32)
    logp = jax.nn.log_softmax(pred.astype(jnp.float32), axis=-1)
    logpt = jnp.take_along_axis(logp, target[:, None], axis=-1)[:, 0]
    pt = jnp.exp(logpt)
    if alpha is not None:
        a = jnp.asarray(alpha, jnp.float32).reshape(-1)
        if a.shape[0] < pred.shape[-1]:
            a = jnp.pad(a, (0, pred.shape[-1] - a.shape[0]), constant_values=1.0)
        logpt = logpt * a[target]
    loss = -(jnp.maximum(1.0 - pt, 0.0) ** gamma) * logpt
    return jnp.mean(loss) if size_average else jnp.sum(loss)


if __name__ == "__main__":
    key = jax.random.PRNGKey(0)
    ks = jax.random.split(key, 8)

    # Test 1: segmentation-style 4-D input (channel-first kernel, no transpose),
    # default FocalLoss(gamma=2, mean).
    B, C, H, W = 2, 4, 16, 16
    x = jax.random.normal(ks[0], (B, C, H, W), dtype=jnp.float32)
    t = jax.random.randint(ks[1], (B, H, W), 0, C, dtype=jnp.int32)
    out1 = focal_loss(x, t, gamma=2.0)
    jax.block_until_ready(out1)
    ref1 = _reference_focal(x, t, gamma=2.0)
    assert jnp.allclose(out1, ref1, atol=1e-5, rtol=1e-5), (out1, ref1)

    # Test 2: 2-D logits, per-class alpha (pre-gathered in wrapper), sum.
    N2, C2 = 10, 32
    p2 = jax.random.normal(ks[2], (N2, C2), dtype=jnp.float32)
    t2 = jax.random.randint(ks[3], (N2,), 0, C2, dtype=jnp.int32)
    a2 = jax.random.uniform(ks[4], (C2,), dtype=jnp.float32)
    out2 = focal_loss(p2, t2, gamma=2.0, alpha=a2, size_average=False)
    jax.block_until_ready(out2)
    ref2 = _reference_focal(p2, t2, gamma=2.0, alpha=a2, size_average=False)
    assert jnp.allclose(out2, ref2, atol=1e-5, rtol=1e-5), (out2, ref2)

    # Test 3: ragged N (partial last tile, no logits pad, row-index mask) and
    # a fractional gamma (exercises the clamped fractional power).
    N3, C3 = 100, 8
    p3 = jax.random.normal(ks[5], (N3, C3), dtype=jnp.float32)
    t3 = jax.random.randint(ks[6], (N3,), 0, C3, dtype=jnp.int32)
    out3 = focal_loss(p3, t3, gamma=1.5, tile_rows=32)
    jax.block_until_ready(out3)
    ref3 = _reference_focal(p3, t3, gamma=1.5)
    assert jnp.allclose(out3, ref3, atol=1e-5, rtol=1e-5), (out3, ref3)

    # Test 4: 4-D input with per-class alpha streamed through the
    # channel-first kernel.
    x4 = jax.random.normal(ks[7], (1, 3, 8, 16), dtype=jnp.float32)
    t4 = jax.random.randint(ks[1], (1, 8, 16), 0, 3, dtype=jnp.int32)
    a4 = [0.25, 0.5, 0.25]
    out4 = focal_loss(x4, t4, gamma=2.0, alpha=a4)
    jax.block_until_ready(out4)
    ref4 = _reference_focal(x4, t4, gamma=2.0, alpha=jnp.array(a4, jnp.float32))
    assert jnp.allclose(out4, ref4, atol=1e-5, rtol=1e-5), (out4, ref4)

    print("KERNEL_OK")
</pallas_src>

<mosaic_0001>
module attributes {stable_mosaic.version = 11 : i64} {
  func.func @kernel(%arg0: i32, %arg1: i32, %arg2: memref<1x4x256xf32, #tpu.memory_space<vmem>>, %arg3: memref<1x1x256xi32, #tpu.memory_space<vmem>>, %arg4: memref<1x1x8x128xf32, #tpu.memory_space<vmem>>) attributes {dimension_semantics = [#tpu.dimension_semantics<parallel>, #tpu.dimension_semantics<parallel>], iteration_bounds = array<i64: 2, 1>, scalar_prefetch = 0 : i64, scratch_operands = 0 : i64, tpu.core_type = #tpu.core_type<tc>, window_params = [{transform_indices = @transform_0, window_bounds = array<i64: 1, 4, 256>}, {transform_indices = @transform_1, window_bounds = array<i64: 1, 1, 256>}, {transform_indices = @transform_2, window_bounds = array<i64: 1, 1, 8, 128>}]} {
    %c0 = arith.constant 0 : index
    %c0_0 = arith.constant 0 : index
    %c0_1 = arith.constant 0 : index
    %0 = vector.load %arg2[%c0, %c0_0, %c0_1] : memref<1x4x256xf32, #tpu.memory_space<vmem>>, vector<1x4x256xf32>
    %c0_2 = arith.constant 0 : index
    %c0_3 = arith.constant 0 : index
    %c0_4 = arith.constant 0 : index
    %1 = vector.load %arg3[%c0_2, %c0_3, %c0_4] : memref<1x1x256xi32, #tpu.memory_space<vmem>>, vector<1x1x256xi32>
    %cst = arith.constant dense<0xFF800000> : vector<1x256xf32>
    %2 = vector.multi_reduction <maximumf>, %0, %cst [1] : vector<1x4x256xf32> to vector<1x256xf32>
    %3 = vector.shape_cast %2 : vector<1x256xf32> to vector<1x1x256xf32>
    %4 = vector.broadcast %3 : vector<1x1x256xf32> to vector<1x4x256xf32>
    %5 = arith.subf %0, %4 : vector<1x4x256xf32>
    %6 = math.exp %5 : vector<1x4x256xf32>
    %cst_5 = arith.constant dense<0.000000e+00> : vector<1x256xf32>
    %7 = vector.multi_reduction <add>, %6, %cst_5 [1] : vector<1x4x256xf32> to vector<1x256xf32>
    %8 = vector.shape_cast %7 : vector<1x256xf32> to vector<1x1x256xf32>
    %9 = math.log %8 : vector<1x1x256xf32>
    %10 = tpu.iota {dimensions = array<i32: 1>} : vector<1x4x256xi32>
    %11 = vector.broadcast %1 : vector<1x1x256xi32> to vector<1x4x256xi32>
    %12 = arith.cmpi eq, %10, %11 : vector<1x4x256xi32>
    %cst_6 = arith.constant 0.000000e+00 : f32
    %13 = vector.broadcast %cst_6 : f32 to vector<1x4x256xf32>
    %14 = arith.select %12, %5, %13 : vector<1x4x256xi1>, vector<1x4x256xf32>
    %cst_7 = arith.constant dense<0.000000e+00> : vector<1x256xf32>
    %15 = vector.multi_reduction <add>, %14, %cst_7 [1] : vector<1x4x256xf32> to vector<1x256xf32>
    %16 = vector.shape_cast %15 : vector<1x256xf32> to vector<1x1x256xf32>
    %17 = arith.subf %16, %9 : vector<1x1x256xf32>
    %18 = math.exp %17 : vector<1x1x256xf32>
    %cst_8 = arith.constant 1.000000e+00 : f32
    %19 = vector.broadcast %cst_8 : f32 to vector<1x1x256xf32>
    %20 = arith.subf %19, %18 : vector<1x1x256xf32>
    %cst_9 = arith.constant 0.000000e+00 : f32
    %21 = vector.broadcast %cst_9 : f32 to vector<1x1x256xf32>
    %22 = arith.maximumf %20, %21 : vector<1x1x256xf32>
    %23 = arith.mulf %22, %22 : vector<1x1x256xf32>
    %cst_10 = arith.constant 0.000000e+00 : f32
    %24 = vector.broadcast %cst_10 : f32 to vector<1x1x256xf32>
    %25 = arith.subf %24, %23 : vector<1x1x256xf32>
    %26 = arith.mulf %25, %17 : vector<1x1x256xf32>
    %c256_i32 = arith.constant 256 : i32
    %27 = arith.muli %arg1, %c256_i32 : i32
    %28 = tpu.iota {dimensions = array<i32: 2>} : vector<1x1x256xi32>
    %29 = vector.broadcast %27 : i32 to vector<1x1x256xi32>
    %30 = arith.addi %29, %28 : vector<1x1x256xi32>
    %c256_i32_11 = arith.constant 256 : i32
    %31 = vector.broadcast %c256_i32_11 : i32 to vector<1x1x256xi32>
    %32 = arith.cmpi slt, %30, %31 : vector<1x1x256xi32>
    %c0_i32 = arith.constant 0 : i32
    %33 = vector.broadcast %c0_i32 : i32 to vector<1x1x256xi32>
    %34 = arith.cmpi sge, %1, %33 : vector<1x1x256xi32>
    %35 = arith.andi %32, %34 : vector<1x1x256xi1>
    %c4_i32 = arith.constant 4 : i32
    %36 = vector.broadcast %c4_i32 : i32 to vector<1x1x256xi32>
    %37 = arith.cmpi slt, %1, %36 : vector<1x1x256xi32>
    %38 = arith.andi %35, %37 : vector<1x1x256xi1>
    %cst_12 = arith.constant 0.000000e+00 : f32
    %39 = vector.broadcast %cst_12 : f32 to vector<1x1x256xf32>
    %40 = arith.select %38, %26, %39 : vector<1x1x256xi1>, vector<1x1x256xf32>
    %cst_13 = arith.constant 0.000000e+00 : f32
    %41 = vector.broadcast %cst_13 : f32 to vector<1x1x8x128xf32>
    %42 = vector.shape_cast %40 : vector<1x1x256xf32> to vector<1x1x1x256xf32>
    %cst_14 = arith.constant dense<0.000000e+00> : vector<1xf32>
    %43 = vector.multi_reduction <add>, %42, %cst_14 [1, 2, 3] : vector<1x1x1x256xf32> to vector<1xf32>
    %44 = vector.shape_cast %43 : vector<1xf32> to vector<1x1x1x1xf32>
    %45 = vector.extract %44[0, 0, 0, 0] : f32 from vector<1x1x1x1xf32>
    %46 = vector.broadcast %45 : f32 to vector<1x1x8x128xf32>
    %47 = arith.addf %41, %46 : vector<1x1x8x128xf32>
    %c0_15 = arith.constant 0 : index
    %c0_16 = arith.constant 0 : index
    %c0_17 = arith.constant 0 : index
    %c0_18 = arith.constant 0 : index
    %48 = vector.load %arg4[%c0_15, %c0_16, %c0_17, %c0_18] : memref<1x1x8x128xf32, #tpu.memory_space<vmem>>, vector<1x1x8x128xf32>
    tpu.vector_store %arg4[%c0_15, %c0_16, %c0_17, %c0_18], %47 {strides = array<i32>} : memref<1x1x8x128xf32, #tpu.memory_space<vmem>>, vector<1x1x8x128xf32>,
    return
  }
  func.func @transform_0(%arg0: i32, %arg1: i32) -> (i32, i32, i32) {
    %c0_i32 = arith.constant 0 : i32
    %c0_i32_0 = arith.constant 0 : i32
    return %arg0, %c0_i32, %arg1 : i32, i32, i32
  }
  func.func @transform_1(%arg0: i32, %arg1: i32) -> (i32, i32, i32) {
    %c0_i32 = arith.constant 0 : i32
    %c0_i32_0 = arith.constant 0 : i32
    return %arg0, %c0_i32, %arg1 : i32, i32, i32
  }
  func.func @transform_2(%arg0: i32, %arg1: i32) -> (i32, i32, i32, i32) {
    %c0_i32 = arith.constant 0 : i32
    %c0_i32_0 = arith.constant 0 : i32
    %c0_i32_1 = arith.constant 0 : i32
    return %arg0, %arg1, %c0_i32, %c0_i32_0 : i32, i32, i32, i32
  }
}

</mosaic_0001>

<llo_original>
// kernel: tpu_custom_call.1
$region0: #{tpu_custom_call.1}
  #allocation0 [shape = 'u32[]', space=smem, size = 0x4, offset = 0x4, fixed_abs, tag = 'smem constant byte address 0x4 - core index']
  #allocation1 [shape = 'u32[144,128]{1,0:T(1,128)}', space=vmem, size = 0x12000, scoped, tag = 'internal scratch']
  %s0 = inlined_call_operand.hbm [shape: f32[2,4,256], index: 0, kind: input, shape index: {}]
  %s1 = inlined_call_operand.hbm [shape: s32[2,1,256], index: 1, kind: input, shape index: {}]
  %s2 = inlined_call_operand.hbm [shape: f32[2,1,8,128], index: 2, kind: output, shape index: {}]
  %s3 = sld [smem:[#allocation0]]
  $region49: #{tpu_custom_call.1} parent=0
    _
  %s5 = ssub.s32 1, %s3
  %s6 = scalar_select 0, %s5, %s3
  $region1: #{tpu_custom_call.1} parent=0
    #allocation2 [shape = 'u8[8192]{0}', space=vmem, size = 0x2000, scoped, tag = 'input window, operand 0']
    #allocation3 [shape = 's32[2]{0}', space=sflag, size = 0x8, scoped, tag = 'scoped memory for tpu_custom_call.1']
    #allocation4 [shape = 's32[2]{0}', space=sflag, size = 0x8, scoped, tag = 'scoped memory for tpu_custom_call.1']
    #allocation5 [shape = 'u8[2048]{0}', space=vmem, size = 0x800, scoped, tag = 'input window, operand 1']
    #allocation6 [shape = 's32[2]{0}', space=sflag, size = 0x8, scoped, tag = 'scoped memory for tpu_custom_call.1']
    #allocation7 [shape = 'u8[8192]{0}', space=vmem, size = 0x2000, scoped, tag = 'output window, operand 0']
    %7 = vsyncpa [#allocation3], 0
    %s8 = scalar_lea.sflag [#allocation3], 1
    %9 = vsyncpa %s8, 0
    %10 = vsyncpa [#allocation6], 0
    %s11 = scalar_lea.sflag [#allocation6], 1
    %12 = vsyncpa %s11, 0
    %13 = vsyncpa [#allocation4], 0
    %s14 = scalar_lea.sflag [#allocation4], 1
    %15 = vsyncpa %s14, 0
    loop: start=0, step=1, limit=4
    $region2: #{tpu_custom_call.1} parent=1 // loop_pre_header
      _
    $region3: #{tpu_custom_call.1} parent=1 // loop_header
      %s17 = sphi 0, %s21
      %p18 = scmp.ge.s32.totalorder %s17, 4
      %s24 = sphi 0, %s36
      %s25 = sphi 0, %s32
      %s26 = sphi 0, %s24
      %s27 = sphi 0, %s25
      %s28 = sphi 0, %s26
      %s29 = sphi 0, %s27
      %s41 = sphi 0, %s43
      %s44 = sphi 0, %s41
      %s45 = sphi 0, %s44
      %s61 = sphi 0, %s45
      %s69 = sphi 0, %s71
      %s72 = sphi 0, %s69
      %s73 = sphi 0, %s72
      %s89 = sphi 0, %s73
      %s97 = sphi 0, %s99
      %s100 = sphi 0, %s97
      %s101 = sphi 0, %s100
      %s117 = sphi 0, %s101
    $region4: #{tpu_custom_call.1} parent=1 // loop_header_branch
      %20 = sbr.rel (%p18) target = $region8
    $region5: #{tpu_custom_call.1} parent=1 // loop_body
      %s22 = ssub.s32 %s17, 1
      %s23 = ssub.s32 %s17, 2
      %s30 = sadd.s32 1, %s25
      %p31 = scmp.ge.s32.totalorder %s30, 1
      %s32 = scalar_select %p31, 0, %s30
      %s33 = sadd.s32 1, %s24
      %s34 = scalar_select %p31, %s33, %s24
      %p35 = scmp.ge.s32.totalorder %s34, 2
      %s36 = scalar_select %p35, 0, %s34
      %s37 = ssub.s32 %s24, %s36
      %s38 = ssub.s32 %s25, %s32
      %s39 = sor.u32 %s37, %s38
      %p40 = scmp.eq.s32.totalorder %s39, 0
      %s42 = sadd.s32 %s41, 1
      %s43 = scalar_select %p40, %s41, %s42
      %p46 = pneg %p40
      %p47 = scmp.eq.s32.totalorder %s17, 1
      %p48 = por %p46, %p47
      %p49 = scmp.ne.s32.totalorder %s41, %s44
      %p50 = scmp.eq.s32.totalorder %s17, 0
      %p51 = por %p49, %p50
      %p52 = scmp.ne.s32.totalorder %s41, %s44
      %p53 = scmp.eq.s32.totalorder %s22, 1
      %p54 = por %p52, %p53
      %p55 = scmp.ne.s32.totalorder %s44, %s45
      %p56 = scmp.eq.s32.totalorder %s22, 0
      %p57 = por %p55, %p56
      %p58 = scmp.ne.s32.totalorder %s44, %s45
      %p59 = scmp.eq.s32.totalorder %s23, 1
      %p60 = por %p58, %p59
      %p62 = scmp.ne.s32.totalorder %s45, %s61
      %p63 = scmp.eq.s32.totalorder %s23, 0
      %p64 = por %p62, %p63
      %s65 = ssub.s32 %s24, %s36
      %s66 = ssub.s32 %s25, %s32
      %s67 = sor.u32 %s65, %s66
      %p68 = scmp.eq.s32.totalorder %s67, 0
      %s70 = sadd.s32 %s69, 1
      %s71 = scalar_select %p68, %s69, %s70
      %p74 = pneg %p68
      %p75 = scmp.eq.s32.totalorder %s17, 1
      %p76 = por %p74, %p75
      %p77 = scmp.ne.s32.totalorder %s69, %s72
      %p78 = scmp.eq.s32.totalorder %s17, 0
      %p79 = por %p77, %p78
      %p80 = scmp.ne.s32.totalorder %s69, %s72
      %p81 = scmp.eq.s32.totalorder %s22, 1
      %p82 = por %p80, %p81
      %p83 = scmp.ne.s32.totalorder %s72, %s73
      %p84 = scmp.eq.s32.totalorder %s22, 0
      %p85 = por %p83, %p84
      %p86 = scmp.ne.s32.totalorder %s72, %s73
      %p87 = scmp.eq.s32.totalorder %s23, 1
      %p88 = por %p86, %p87
      %p90 = scmp.ne.s32.totalorder %s73, %s89
      %p91 = scmp.eq.s32.totalorder %s23, 0
      %p92 = por %p90, %p91
      %s93 = ssub.s32 %s24, %s36
      %s94 = ssub.s32 %s25, %s32
      %s95 = sor.u32 %s93, %s94
      %p96 = scmp.eq.s32.totalorder %s95, 0
      %s98 = sadd.s32 %s97, 1
      %s99 = scalar_select %p96, %s97, %s98
      %p102 = pneg %p96
      %p103 = scmp.eq.s32.totalorder %s17, 1
      %p104 = por %p102, %p103
      %p105 = scmp.ne.s32.totalorder %s97, %s100
      %p106 = scmp.eq.s32.totalorder %s17, 0
      %p107 = por %p105, %p106
      %p108 = scmp.ne.s32.totalorder %s97, %s100
      %p109 = scmp.eq.s32.totalorder %s22, 1
      %p110 = por %p108, %p109
      %p111 = scmp.ne.s32.totalorder %s100, %s101
      %p112 = scmp.eq.s32.totalorder %s22, 0
      %p113 = por %p111, %p112
      %p114 = scmp.ne.s32.totalorder %s100, %s101
      %p115 = scmp.eq.s32.totalorder %s23, 1
      %p116 = por %p114, %p115
      %p118 = scmp.ne.s32.totalorder %s101, %s117
      %p119 = scmp.eq.s32.totalorder %s23, 0
      %p120 = por %p118, %p119
      %p121 = scmp.le.s32.totalorder 1, %s17
      %p122 = scmp.lt.s32.totalorder %s17, 3
      %p123 = pnand %p121, %p122
      %p124 = pneg %p123
      // Predicated region
      $region9: #{tpu_custom_call.1} parent=5 // pred_check
        _
      $region10: #{tpu_custom_call.1} parent=5 // pred_check_branch
        %126 = sbr.rel (%p123) target = $region12
      $region11: #{tpu_custom_call.1} parent=5 // pred_region
        %s127 = ssub.s32 %s17, 1
      $region12: #{tpu_custom_call.1} parent=5 // pred_fallthru
        _
      %p128 = scmp.lt.s32.totalorder %s17, 2
      // Predicated region
      $region13: #{tpu_custom_call.1} parent=5 // pred_check
        %p129 = pneg %p128
      $region14: #{tpu_custom_call.1} parent=5 // pred_check_branch
        %131 = sbr.rel (%p129) target = $region16
      $region15: #{tpu_custom_call.1} parent=5 // pred_region
        // Predicated region
        $region17: #{tpu_custom_call.1} parent=15 // pred_check
          %p132 = pneg %p51
        $region18: #{tpu_custom_call.1} parent=15 // pred_check_branch
          %134 = sbr.rel (%p132) target = $region20
        $region19: #{tpu_custom_call.1} parent=15 // pred_region
          %s135 = sand.u32 %s41, 1
          %s136 = scalar_lea.sflag [#allocation3], %s135
          %s137 = sand.u32 %s41, 1
          %s138 = smul.addr %s137, 8
          %s139 = scalar_lea.vmem [#allocation2], %s138
          %s140 = smul.u32 2, %s25
          %s142 = ssub.s32 128, 128
          %143 = vsyncadd %s136, %s142
          %s144 = smul.addr %s24, 2
          %s145 = sadd.s32 %s140, %s144
          %s146 = smul.addr %s145, 64
          %s147 = scalar_lea.hbm %s0, %s146
          %s149 = sshll.u32 %s139, 4
          %s150 = int_to_ptr.vmem [resolvable:$true] %s149
          %152 = dma.hbm_to_vmem [thread:$0]  %s147, 128, %s150, %s136
        $region20: #{tpu_custom_call.1} parent=15 // pred_fallthru
          _
        // Predicated region
        $region21: #{tpu_custom_call.1} parent=15 // pred_check
          %p153 = pneg %p79
        $region22: #{tpu_custom_call.1} parent=15 // pred_check_branch
          %155 = sbr.rel (%p153) target = $region24
        $region23: #{tpu_custom_call.1} parent=15 // pred_region
          %s156 = sand.u32 %s69, 1
          %s157 = scalar_lea.sflag [#allocation6], %s156
          %s158 = sand.u32 %s69, 1
          %s159 = smul.addr %s158, 2
          %s160 = scalar_lea.vmem [#allocation5], %s159
          %s161 = smul.u32 2, %s25
          %s163 = ssub.s32 32, 32
          %164 = vsyncadd %s157, %s163
          %s165 = smul.addr %s24, 2
          %s166 = sadd.s32 %s161, %s165
          %s167 = smul.addr %s166, 16
          %s168 = scalar_lea.hbm %s1, %s167
          %s170 = sshll.u32 %s160, 4
          %s171 = int_to_ptr.vmem [resolvable:$true] %s170
          %173 = dma.hbm_to_vmem [thread:$0]  %s168, 32, %s171, %s157
        $region24: #{tpu_custom_call.1} parent=15 // pred_fallthru
          _
      $region16: #{tpu_custom_call.1} parent=5 // pred_fallthru
        _
      %p174 = scmp.le.s32.totalorder 1, %s17
      %p175 = scmp.lt.s32.totalorder %s17, 3
      %p176 = pnand %p174, %p175
      %p177 = pneg %p176
      // Predicated region
      $region25: #{tpu_custom_call.1} parent=5 // pred_check
        _
      $region26: #{tpu_custom_call.1} parent=5 // pred_check_branch
        %179 = sbr.rel (%p176) target = $region28
      $region27: #{tpu_custom_call.1} parent=5 // pred_region
        %s180 = ssub.s32 %s17, 1
        %s181 = sand.u32 %s44, 1
        %s182 = scalar_lea.sflag [#allocation3], %s181
        %s183 = sand.u32 %s44, 1
        %s184 = smul.addr %s183, 8
        %s185 = scalar_lea.vmem [#allocation2], %s184
        // Predicated region
        $region29: #{tpu_custom_call.1} parent=27 // pred_check
          %p186 = pneg %p57
        $region30: #{tpu_custom_call.1} parent=27 // pred_check_branch
          %188 = sbr.rel (%p186) target = $region32
        $region31: #{tpu_custom_call.1} parent=27 // pred_region
          %189 = dma.done %s182, 128
        $region32: #{tpu_custom_call.1} parent=27 // pred_fallthru
          _
        %s190 = sand.u32 %s72, 1
        %s191 = scalar_lea.sflag [#allocation6], %s190
        %s192 = sand.u32 %s72, 1
        %s193 = smul.addr %s192, 2
        %s194 = scalar_lea.vmem [#allocation5], %s193
        // Predicated region
        $region33: #{tpu_custom_call.1} parent=27 // pred_check
          %p195 = pneg %p85
        $region34: #{tpu_custom_call.1} parent=27 // pred_check_branch
          %197 = sbr.rel (%p195) target = $region36
        $region35: #{tpu_custom_call.1} parent=27 // pred_region
          %198 = dma.done %s191, 32
        $region36: #{tpu_custom_call.1} parent=27 // pred_fallthru
          _
        %s199 = sand.u32 %s44, 1
        %s200 = scalar_lea.sflag [#allocation3], %s199
        %s201 = sand.u32 %s44, 1
        %s202 = smul.addr %s201, 8
        %s203 = scalar_lea.vmem [#allocation2], %s202
        %p204 = pneg %p57
        %p205 = pneg %p54
        %s206 = sand.u32 %s72, 1
        %s207 = scalar_lea.sflag [#allocation6], %s206
        %s208 = sand.u32 %s72, 1
        %s209 = smul.addr %s208, 2
        %s210 = scalar_lea.vmem [#allocation5], %s209
        %p211 = pneg %p85
        %p212 = pneg %p82
        %p213 = pneg %p113
        %p214 = pneg %p110
        %s215 = sand.u32 %s100, 1
        %s216 = scalar_lea.sflag [#allocation4], %s215
        %s217 = sand.u32 %s100, 1
        %s218 = smul.addr %s217, 8
        %s219 = scalar_lea.vmem [#allocation7], %s218
        %s220 = smul.u32 2, %s27
        %s221 = smul.u32 2, %s27
        %v222 = vld [vmem:[%s185] sm:$0xff]
        %v223 = vld [vmem:[%s194] sm:$0x3]
        %v225 = vcombine.high %v222, %v222
        %vm227 = vcmask 1043456
        %v228 = vsel %vm227, %v222, -inf
        %v229 = vrot.slane %v228, 4
        %v230 = vmax.f32 %v228, %v229
        %v231 = vrot.slane %v230, 2
        %v232 = vmax.f32 %v230, %v231
        %v233 = vrot.slane %v232, 1
        %v234 = vmax.f32 %v232, %v233
        %v235 = vsel %vm227, %v225, -inf
        %v236 = vrot.slane %v235, 4
        %v237 = vmax.f32 %v235, %v236
        %v238 = vrot.slane %v237, 2
        %v239 = vmax.f32 %v237, %v238
        %v240 = vrot.slane %v239, 1
        %v241 = vmax.f32 %v239, %v240
        %v244 = vcombine.low %v234, %v241
        %v246 = vsub.f32 %v222, %v244
        %v247 = vmul.f32 %v246, 1.442695
        %v248 = vpow.pop %v247
        %v250 = vcombine.high %v248, %v248
        %v252 = vsel %vm227, %v248, 0.0
        %v253 = vrot.slane %v252, 4
        %v254 = vadd.f32 %v252, %v253
        %v255 = vrot.slane %v254, 2
        %v256 = vadd.f32 %v254, %v255
        %v257 = vrot.slane %v256, 1
        %v258 = vadd.f32 %v256, %v257
        %v259 = vsel %vm227, %v250, 0.0
        %v260 = vrot.slane %v259, 4
        %v261 = vadd.f32 %v259, %v260
        %v262 = vrot.slane %v261, 2
        %v263 = vadd.f32 %v261, %v262
        %v264 = vrot.slane %v263, 1
        %v265 = vadd.f32 %v263, %v264
        %v266 = vlog2.pop %v258
        %v267 = vmul.f32 %v266, 0.6931472
        %v268 = vlog2.pop %v265
        %v269 = vmul.f32 %v268, 0.6931472
        %v270 = vlaneseq
        %v271 = vshrl.u32 %v270, 7
        %v272 = vlaneseq
        %v273 = vshrl.u32 %v272, 7
        %v274 = vsub.s32 0, %v273
        %v275 = vrot.slane %v223, %v274
        %v276 = vlaneseq
        %v277 = vshrl.u32 %v276, 7
        %v278 = vsub.s32 1, %v277
        %v279 = vrot.slane %v223, %v278
        %vm280 = vcmp.eq.s32.totalorder %v271, %v275
        %vm281 = vcmp.eq.s32.totalorder %v271, %v279
        %v283 = vcombine.high %v246, %v246
        %v285 = vsel %vm280, %v246, 0.0
        %v286 = vsel %vm281, %v283, 0.0
        %v287 = vsel %vm227, %v285, 0.0
        %v288 = vrot.slane %v287, 4
        %v289 = vadd.f32 %v287, %v288
        %v290 = vrot.slane %v289, 2
        %v291 = vadd.f32 %v289, %v290
        %v292 = vrot.slane %v291, 1
        %v293 = vadd.f32 %v291, %v292
        %v294 = vsel %vm227, %v286, 0.0
        %v295 = vrot.slane %v294, 4
        %v296 = vadd.f32 %v294, %v295
        %v297 = vrot.slane %v296, 2
        %v298 = vadd.f32 %v296, %v297
        %v299 = vrot.slane %v298, 1
        %v300 = vadd.f32 %v298, %v299
        %v301 = vsub.f32 %v293, %v267
        %v302 = vsub.f32 %v300, %v269
        %v303 = vmul.f32 %v301, 1.442695
        %v304 = vpow.pop %v303
        %v305 = vmul.f32 %v302, 1.442695
        %v306 = vpow.pop %v305
        %v307 = vsub.f32 1.0, %v304
        %v308 = vsub.f32 1.0, %v306
        %v309 = vmax.f32 %v307, 0.0
        %v310 = vmax.f32 %v308, 0.0
        %v311 = vmul.f32 %v309, %v309
        %v312 = vmul.f32 %v310, %v310
        %v313 = vsub.f32 0.0, %v311
        %v314 = vsub.f32 0.0, %v312
        %v315 = vmul.f32 %v313, %v301
        %v316 = vmul.f32 %v314, %v302
        %s317 = smul.u32 %s27, 256
        %v318 = vlaneseq
        %v319 = vand.u32 %v318, 127
        %v320 = vadd.s32 %v319, 128
        %v321 = vstv %s317
        %v322 = vadd.s32 %v321, %v319
        %v323 = vadd.s32 %v321, %v320
        %vm324 = vcmp.lt.s32.totalorder %v322, 256
        %vm325 = vcmp.lt.s32.totalorder %v323, 256
        %vm326 = vcmp.ge.s32.totalorder %v223, 0
        %v327 = vsel %vm326, 1, 0
        %v328 = vlaneseq
        %v329 = vshrl.u32 %v328, 7
        %v330 = vsub.s32 0, %v329
        %v331 = vrot.slane %v327, %v330
        %v332 = vlaneseq
        %v333 = vshrl.u32 %v332, 7
        %v334 = vsub.s32 1, %v333
        %v335 = vrot.slane %v327, %v334
        %vm336 = vcmp.ne.s32.totalorder %v331, 0
        %vm337 = vcmp.ne.s32.totalorder %v335, 0
        %vm338 = vmand %vm324, %vm336
        %vm339 = vmand %vm325, %vm337
        %vm340 = vcmp.lt.s32.totalorder %v223, 4
        %v341 = vsel %vm340, 1, 0
        %v342 = vlaneseq
        %v343 = vshrl.u32 %v342, 7
        %v344 = vsub.s32 0, %v343
        %v345 = vrot.slane %v341, %v344
        %v346 = vlaneseq
        %v347 = vshrl.u32 %v346, 7
        %v348 = vsub.s32 1, %v347
        %v349 = vrot.slane %v341, %v348
        %vm350 = vcmp.ne.s32.totalorder %v345, 0
        %vm351 = vcmp.ne.s32.totalorder %v349, 0
        %vm352 = vmand %vm338, %vm350
        %vm353 = vmand %vm339, %vm351
        %v354 = vsel %vm352, %v315, 0.0
        %v355 = vsel %vm353, %v316, 0.0
        %vm356 = vcmask 1040384
        %v357 = vsel %vm356, %v354, 0.0
        %v358 = vsel %vm356, %v355, 0.0
        %v359 = vadd.f32 %v357, %v358
        %360 = vadd.xlane.f32.xlu0 %v359
        %v361 = vpop.xlane.xlu0 %360
        %v362 = vrot.slane %v361, 4
        %v363 = vadd.f32 %v361, %v362
        %v364 = vrot.slane %v363, 2
        %v365 = vadd.f32 %v363, %v364
        %v366 = vrot.slane %v365, 1
        %v367 = vadd.f32 %v365, %v366
        %s368 = vtos %v367
        %v369 = vstv %s368
        %v370 = vadd.f32 %v369, 0.0
        %371 = vst [vmem:[%s219] sm:$0xff] %v370
        %s372 = sand.u32 %s100, 1
        %s373 = scalar_lea.sflag [#allocation4], %s372
        %s374 = sand.u32 %s100, 1
        %s375 = smul.addr %s374, 8
        %s376 = scalar_lea.vmem [#allocation7], %s375
        // Predicated region
        $region37: #{tpu_custom_call.1} parent=27 // pred_check
          %p377 = pneg %p110
        $region38: #{tpu_custom_call.1} parent=27 // pred_check_branch
          %379 = sbr.rel (%p377) target = $region40
        $region39: #{tpu_custom_call.1} parent=27 // pred_region
          %s381 = ssub.s32 128, 128
          %382 = vsyncadd %s373, %s381
          %s383 = sadd.s32 %s27, %s26
          %s384 = smul.addr %s383, 128
          %s385 = scalar_lea.hbm %s2, %s384
          %s387 = sshll.u32 %s376, 4
          %s388 = int_to_ptr.vmem [resolvable:$true] %s387
          %390 = dma.vmem_to_hbm [thread:$0]  %s388, 128, %s385, %s373
        $region40: #{tpu_custom_call.1} parent=27 // pred_fallthru
          _
      $region28: #{tpu_custom_call.1} parent=5 // pred_fallthru
        _
      %p391 = scmp.le.s32.totalorder 2, %s17
      // Predicated region
      $region41: #{tpu_custom_call.1} parent=5 // pred_check
        %p392 = pneg %p391
      $region42: #{tpu_custom_call.1} parent=5 // pred_check_branch
        %394 = sbr.rel (%p392) target = $region44
      $region43: #{tpu_custom_call.1} parent=5 // pred_region
        %s395 = ssub.s32 %s17, 2
        // Predicated region
        $region45: #{tpu_custom_call.1} parent=43 // pred_check
          %p396 = pneg %p116
        $region46: #{tpu_custom_call.1} parent=43 // pred_check_branch
          %398 = sbr.rel (%p396) target = $region48
        $region47: #{tpu_custom_call.1} parent=43 // pred_region
          %s399 = sand.u32 %s101, 1
          %s400 = scalar_lea.sflag [#allocation4], %s399
          %s401 = sand.u32 %s101, 1
          %s402 = smul.addr %s401, 8
          %s403 = scalar_lea.vmem [#allocation7], %s402
          %404 = dma.done %s400, 128
        $region48: #{tpu_custom_call.1} parent=43 // pred_fallthru
          _
      $region44: #{tpu_custom_call.1} parent=5 // pred_fallthru
        _
    $region6: #{tpu_custom_call.1} parent=1 // loop_footer
      %s21 = sadd.s32 1, %s17
    $region7: #{tpu_custom_call.1} parent=1 // loop_footer_branch
      %16 = sbr.rel target = $region3
    $region8: #{tpu_custom_call.1} parent=1 // loop_exit
      _
    %405 = vsyncpa [#allocation3], 1
    %s406 = scalar_lea.sflag [#allocation3], 1
    %407 = vsyncpa %s406, 1
    %408 = vsyncpa [#allocation6], 1
    %s409 = scalar_lea.sflag [#allocation6], 1
    %410 = vsyncpa %s409, 1
    %411 = vsyncpa [#allocation4], 1
    %s412 = scalar_lea.sflag [#allocation4], 1
    %413 = vsyncpa %s412, 1

</llo_original>
